<compile_context>
chip_gen: v5e
topology: v5e:2x2
jax: 0.10.0
libtpu: 0.0.40
codegen_flags: <defaults>
</compile_context>

<pallas_src>
import functools

import jax
import jax.numpy as jnp
import numpy as np
from jax import lax
from jax.experimental import pallas as pl
from jax.experimental.pallas import tpu as pltpu

_IDENTITY_BLOCK_BYTES = 4 << 20   # local_size == 1: pure streaming elementwise
_FILTER_BLOCK_BYTES = 2 << 20     # p > 0: kernel holds ~6 block-sized temporaries
_ROLL_ACROSS_MAX_F32_BLOCK = 6 << 20  # max f32 block for the lane-roll across path
_VMEM_CAP_BYTES = 64 << 20        # never request more than v7x physical VMEM


def _default_accum_dtype():
    """bf16 accumulation for the shift-and-add filter on v6e/v7x (bf16 VALU,
    halves XLU roll traffic); f32 on v5e (no bf16 VALU) and unknown devices."""
    try:
        kind = jax.devices()[0].device_kind.lower()
    except Exception:
        return jnp.float32
    if "v6" in kind or "v7" in kind:
        return jnp.bfloat16
    return jnp.float32


def _round_up(v, m):
    return ((v + m - 1) // m) * m


def _sublane_multiple(itemsize):
    # 8 rows for 4-byte dtypes, 16 for bf16/fp16, 32 for int8/fp8 (packed sublanes).
    return 8 * max(1, 4 // int(itemsize))


def _row_tile(nrows, ncols, itemsize, block_bytes, sub):
    """Row tile for a (nrows, ncols) view targeting ~block_bytes of input."""
    if nrows <= sub:
        return nrows
    target = max(sub, block_bytes // max(1, itemsize * ncols))
    tb = min(nrows, target)
    tb = max(sub, (tb // sub) * sub)
    # Megacore: if everything fits in one block, split so the parallel grid has
    # >= 2 steps (keeps both v7x TensorCores busy; no-op for v5e/v6e correctness).
    if tb >= nrows and nrows >= 2 * sub:
        tb = _round_up(pl.cdiv(nrows, 2), sub)
    return tb


def _spatial_tile(nchan, ncols, itemsize, block_bytes, nbatch):
    """Lane tile for the (C, THW) across-channel matmul fallback."""
    if ncols <= 128:
        return ncols
    target = max(128, block_bytes // max(1, itemsize * nchan))
    t = min(ncols, target)
    t = max(128, (t // 128) * 128)
    if nbatch * pl.cdiv(ncols, t) < 2 and ncols >= 256:  # megacore: >= 2 grid steps
        t = _round_up(pl.cdiv(ncols, 2), 128)
    return t


def _vmem_limit(block_elems, in_itemsize, out_itemsize, n_f32_temps, extra_bytes=0):
    """Explicit scoped-VMEM budget: double-buffered in/out + f32 temporaries."""
    live = block_elems * (2 * in_itemsize + 2 * out_itemsize + 4 * n_f32_temps)
    live += extra_bytes
    limit = int(live * 1.5) + (2 << 20)          # 50% margin + 2 MiB slack
    return int(min(max(limit, 16 << 20), _VMEM_CAP_BYTES))


def _normalize(x, avg, alpha, beta, k, out_dtype):
    # x / (avg*alpha + k)^beta  ==  x * exp(-beta * log(avg*alpha + k)).
    # EUP transcendentals; no per-element f32 divide.
    inv = jnp.exp((-float(beta)) * jnp.log(avg * float(alpha) + float(k)))
    return (x * inv).astype(out_dtype)


# --------------------------------------------------------------------------
# Kernels
# --------------------------------------------------------------------------
def _lrn_identity_kernel(x_ref, o_ref, *, norm, alpha, beta, k):
    """local_size == 1 (module default): the windowed average is x^2 * norm."""
    x = x_ref[...].astype(jnp.float32)
    avg = (x * x) * float(norm)
    o_ref[...] = _normalize(x, avg, alpha, beta, k, o_ref.dtype)


def _lrn_within_kernel(x_ref, widx_ref, o_ref, *, height, width, local_size,
                       alpha, beta, k, acc_dtype):
    """Within-channel LRN on a (TB, H*W) block (each row = one full plane)."""
    x = x_ref[...].astype(jnp.float32)
    hw = height * width
    p = (local_size - 1) // 2
    x2 = (x * x).astype(acc_dtype)
    w_idx = widx_ref[...]                                     # (1, H*W): col -> W coord
    col = lax.broadcasted_iota(jnp.int32, (1, hw), 1)         # flattened lane index
    zero = jnp.zeros((), acc_dtype)

    def shifted(v, delta):
        # result[:, j] = v[:, j + delta] (cyclic; wrap removed by the edge masks).
        return pltpu.roll(v, shift=(-delta) % hw, axis=1)

    # Separable zero-padded box filter as shift-and-adds (VPU/XLU only).
    acc_w = x2
    for d in range(1, p + 1):                                 # W direction
        acc_w = acc_w + jnp.where(w_idx < width - d, shifted(x2, d), zero)
        acc_w = acc_w + jnp.where(w_idx >= d, shifted(x2, -d), zero)
    acc = acc_w
    for e in range(1, p + 1):                                 # H direction
        # row(j) < height - e  <=>  j < (height - e) * width   (no div/mod needed)
        acc = acc + jnp.where(col < (height - e) * width, shifted(acc_w, e * width), zero)
        acc = acc + jnp.where(col >= e * width, shifted(acc_w, -e * width), zero)

    avg = acc.astype(jnp.float32) * (1.0 / float(local_size * local_size))
    o_ref[...] = _normalize(x, avg, alpha, beta, k, o_ref.dtype)


def _lrn_across_roll_kernel(x_ref, o_ref, *, channels, hw, local_size,
                            alpha, beta, k, acc_dtype):
    """Across-channel LRN on a (TB, C*H*W) block: channel neighbours are +/-(H*W)
    lanes away, so the 1-D C filter is lane shift-and-adds (no MXU, no band)."""
    x = x_ref[...].astype(jnp.float32)
    chw = channels * hw
    p = (local_size - 1) // 2
    x2 = (x * x).astype(acc_dtype)
    col = lax.broadcasted_iota(jnp.int32, (1, chw), 1)
    zero = jnp.zeros((), acc_dtype)

    def shifted(v, delta):
        return pltpu.roll(v, shift=(-delta) % chw, axis=1)

    acc = x2
    for d in range(1, p + 1):
        # channel(j) < channels - d  <=>  j < (channels - d) * hw
        acc = acc + jnp.where(col < (channels - d) * hw, shifted(x2, d * hw), zero)
        acc = acc + jnp.where(col >= d * hw, shifted(x2, -d * hw), zero)

    avg = acc.astype(jnp.float32) * (1.0 / float(local_size))
    o_ref[...] = _normalize(x, avg, alpha, beta, k, o_ref.dtype)


def _lrn_across_matmul_kernel(x_ref, band_ref, o_ref, *, local_size, alpha, beta, k):
    """Fallback for very large C*H*W planes: (C, THW) block, resident CxC 0/1 band,
    exact HIGHEST-precision f32 matmul (fixes the DEFAULT-precision drift)."""
    x = x_ref[...].astype(jnp.float32)
    x2 = x * x
    acc = jnp.dot(band_ref[...], x2, preferred_element_type=jnp.float32,
                  precision=lax.Precision.HIGHEST)
    avg = acc * (1.0 / float(local_size))
    o_ref[...] = _normalize(x, avg, alpha, beta, k, o_ref.dtype)


# --------------------------------------------------------------------------
# Wrapper
# --------------------------------------------------------------------------
def lrn_pallas(x, local_size=1, alpha=1.0, beta=0.75, k=1.0,
               across_channels=False, *, row_tile=None, spatial_tile=None,
               accum_dtype=None, across_impl=None):
    """Pallas implementation of LRN.forward for an NCHW input."""
    n, c, h, w = x.shape
    hw = h * w
    numel = n * c * hw
    itemsize = int(jnp.dtype(x.dtype).itemsize)
    sub = _sublane_multiple(itemsize)
    p = (local_size - 1) // 2
    acc_dtype = accum_dtype if accum_dtype is not None else _default_accum_dtype()

    # ---------------- local_size == 1: pure elementwise (module default) -----
    if p == 0:
        nc = n * c
        xf = x.reshape(nc, hw)
        tb = row_tile if row_tile is not None else _row_tile(
            nc, hw, itemsize, _IDENTITY_BLOCK_BYTES, sub)
        grid = (pl.cdiv(nc, tb),)
        spec = pl.BlockSpec((tb, hw), lambda i: (i, 0))
        norm = 1.0 / float(local_size if across_channels else local_size * local_size)
        kern = functools.partial(_lrn_identity_kernel, norm=norm,
                                 alpha=alpha, beta=beta, k=k)
        cost = pl.CostEstimate(flops=8 * numel, transcendentals=2 * numel,
                               bytes_accessed=2 * numel * itemsize)
        params = pltpu.CompilerParams(
            dimension_semantics=("parallel",),
            vmem_limit_bytes=_vmem_limit(tb * hw, itemsize, itemsize, 3),
            allow_input_fusion=[True])  # streaming op: let the producer fuse in
        out = pl.pallas_call(
            kern, out_shape=jax.ShapeDtypeStruct((nc, hw), x.dtype),
            grid=grid, in_specs=[spec], out_specs=spec,
            compiler_params=params, cost_estimate=cost)(xf)
        return out.reshape(n, c, h, w)

    # ---------------- across-channel mode, p > 0 -----------------------------
    if across_channels:
        chw = c * hw
        min_tb = n if n < sub else sub
        use_roll = (min_tb * chw * 4) <= _ROLL_ACROSS_MAX_F32_BLOCK
        if across_impl == "matmul":
            use_roll = False
        elif across_impl == "roll":
            use_roll = True

        if use_roll:
            xf = x.reshape(n, chw)
            tb = row_tile if row_tile is not None else _row_tile(
                n, chw, itemsize, _FILTER_BLOCK_BYTES, sub)
            grid = (pl.cdiv(n, tb),)
            spec = pl.BlockSpec((tb, chw), lambda i: (i, 0))
            kern = functools.partial(_lrn_across_roll_kernel, channels=c, hw=hw,
                                     local_size=local_size, alpha=alpha, beta=beta,
                                     k=k, acc_dtype=acc_dtype)
            cost = pl.CostEstimate(flops=numel * (8 + 6 * p),
                                   transcendentals=2 * numel,
                                   bytes_accessed=2 * numel * itemsize)
            params = pltpu.CompilerParams(
                dimension_semantics=("parallel",),
                vmem_limit_bytes=_vmem_limit(tb * chw, itemsize, itemsize, 6))
            out = pl.pallas_call(
                kern, out_shape=jax.ShapeDtypeStruct((n, chw), x.dtype),
                grid=grid, in_specs=[spec], out_specs=spec,
                compiler_params=params, cost_estimate=cost)(xf)
            return out.reshape(n, c, h, w)

        # Fallback for huge C*H*W planes: HW-tiled band matmul at HIGHEST precision.
        xf = x.reshape(n, c, hw)
        thw = spatial_tile if spatial_tile is not None else _spatial_tile(
            c, hw, itemsize, _FILTER_BLOCK_BYTES, n)
        grid = (n, pl.cdiv(hw, thw))
        x_spec = pl.BlockSpec((None, c, thw), lambda i, j: (i, 0, j))
        # 0/1 band built once on the host; constant index_map keeps it resident.
        band = jnp.asarray(
            np.abs(np.arange(c)[:, None] - np.arange(c)[None, :]) <= p,
            dtype=jnp.float32)
        band_spec = pl.BlockSpec((c, c), lambda i, j: (0, 0))
        kern = functools.partial(_lrn_across_matmul_kernel, local_size=local_size,
                                 alpha=alpha, beta=beta, k=k)
        cost = pl.CostEstimate(flops=numel * (8 + 2 * c),
                               transcendentals=2 * numel,
                               bytes_accessed=2 * numel * itemsize + 4 * c * c)
        params = pltpu.CompilerParams(
            dimension_semantics=("parallel", "parallel"),
            vmem_limit_bytes=_vmem_limit(c * thw, itemsize, itemsize, 4,
                                         extra_bytes=2 * 4 * c * c))
        out = pl.pallas_call(
            kern, out_shape=jax.ShapeDtypeStruct((n, c, hw), x.dtype),
            grid=grid, in_specs=[x_spec, band_spec], out_specs=x_spec,
            compiler_params=params, cost_estimate=cost)(xf, band)
        return out.reshape(n, c, h, w)

    # ---------------- within-channel mode, p > 0 (module default mode) -------
    nc = n * c
    xf = x.reshape(nc, hw)
    tb = row_tile if row_tile is not None else _row_tile(
        nc, hw, itemsize, _FILTER_BLOCK_BYTES, sub)
    grid = (pl.cdiv(nc, tb),)
    x_spec = pl.BlockSpec((tb, hw), lambda i: (i, 0))
    # Single small resident input: flattened-column -> W coordinate (the H-direction
    # masks are computed from an in-kernel lane iota, so only one idx buffer stays
    # resident).  TODO(synk): single-buffer it with pipeline_mode=pl.Buffered(1)
    # once that is verified to lower cleanly on all target generations.
    w_idx = jnp.asarray((np.arange(hw, dtype=np.int32) % w)[None, :])
    idx_spec = pl.BlockSpec((1, hw), lambda i: (0, 0))
    kern = functools.partial(_lrn_within_kernel, height=h, width=w,
                             local_size=local_size, alpha=alpha, beta=beta, k=k,
                             acc_dtype=acc_dtype)
    cost = pl.CostEstimate(flops=numel * (8 + 12 * p),
                           transcendentals=2 * numel,
                           bytes_accessed=2 * numel * itemsize + 4 * hw)
    params = pltpu.CompilerParams(
        dimension_semantics=("parallel",),
        vmem_limit_bytes=_vmem_limit(tb * hw, itemsize, itemsize, 6,
                                     extra_bytes=2 * 4 * hw))
    out = pl.pallas_call(
        kern, out_shape=jax.ShapeDtypeStruct((nc, hw), x.dtype),
        grid=grid, in_specs=[x_spec, idx_spec], out_specs=x_spec,
        compiler_params=params, cost_estimate=cost)(xf, w_idx)
    return out.reshape(n, c, h, w)


# --------------------------------------------------------------------------
# NumPy reference (matches PyTorch LRN.forward, AvgPool count_include_pad=True)
# --------------------------------------------------------------------------
def lrn_reference(x, local_size=1, alpha=1.0, beta=0.75, k=1.0,
                  across_channels=False):
    x = np.asarray(x, dtype=np.float32)
    n, c, h, w = x.shape
    p = (local_size - 1) // 2
    x2 = x * x
    if across_channels:
        xp = np.pad(x2, ((0, 0), (p, p), (0, 0), (0, 0)))
        acc = np.zeros_like(x2)
        for dc in range(2 * p + 1):
            acc += xp[:, dc:dc + c, :, :]
        div = acc / float(local_size)
    else:
        xp = np.pad(x2, ((0, 0), (0, 0), (p, p), (p, p)))
        acc = np.zeros_like(x2)
        for di in range(2 * p + 1):
            for dj in range(2 * p + 1):
                acc += xp[:, :, di:di + h, dj:dj + w]
        div = acc / float(local_size * local_size)
    div = (div * alpha + k) ** beta
    return x / div


if __name__ == "__main__":
    key = jax.random.PRNGKey(0)
    k1, k2 = jax.random.split(key)
    x_small = jax.random.normal(k1, (2, 4, 16, 16), dtype=jnp.float32)
    x_big = jax.random.normal(k2, (2, 16, 16, 16), dtype=jnp.float32)

    bf16_accum = _default_accum_dtype() == jnp.bfloat16
    rtol = 6e-3 if bf16_accum else 2e-3
    atol = 1e-4 if bf16_accum else 2e-5

    cases = [
        # Module defaults: LRN() -> local_size=1, alpha=1.0, beta=0.75, k=1,
        # ACROSS_CHANNELS=False (this is how Inception_v3 uses it).
        (x_small, dict()),
        # Within-channel shift-and-add box-filter path.
        (x_small, dict(local_size=3, alpha=1e-2)),
        (x_small, dict(local_size=5, alpha=1e-2)),
        # Across-channel lane-roll path (no MXU, no band matrix).
        (x_small, dict(local_size=3, alpha=1e-2, across_channels=True)),
        (x_small, dict(local_size=5, alpha=1e-2, across_channels=True)),
        # Multi-step grids: explicit row tile and auto tile (megacore split).
        (x_big, dict(local_size=3, alpha=1e-2, row_tile=8)),
        (x_big, dict(local_size=3, alpha=1e-2)),
        # Across-channel matmul fallback (HIGHEST precision), HW-tiled grid.
        (x_small, dict(local_size=3, alpha=1e-2, across_channels=True,
                       across_impl="matmul", spatial_tile=128)),
    ]
    ref_keys = ("local_size", "alpha", "beta", "k", "across_channels")
    for xin, cfg in cases:
        out = jax.block_until_ready(lrn_pallas(xin, **cfg))
        ref_cfg = {kk: vv for kk, vv in cfg.items() if kk in ref_keys}
        ref = lrn_reference(np.asarray(xin), **ref_cfg)
        np.testing.assert_allclose(np.asarray(out), ref, rtol=rtol, atol=atol)

    print("KERNEL_OK")
</pallas_src>

<mosaic_0001>
module attributes {stable_mosaic.version = 11 : i64} {
  func.func @_lrn_identity_kernel(%arg0: i32, %arg1: memref<8x256xf32, #tpu.memory_space<vmem>>, %arg2: memref<8x256xf32, #tpu.memory_space<vmem>>) attributes {dimension_semantics = [#tpu.dimension_semantics<parallel>], iteration_bounds = array<i64: 1>, scalar_prefetch = 0 : i64, scratch_operands = 0 : i64, tpu.core_type = #tpu.core_type<tc>, window_params = [{transform_indices = @transform_0, window_bounds = array<i64: 8, 256>}, {transform_indices = @transform_1, window_bounds = array<i64: 8, 256>}]} {
    %c0 = arith.constant 0 : index
    %c0_0 = arith.constant 0 : index
    %0 = vector.load %arg1[%c0, %c0_0] : memref<8x256xf32, #tpu.memory_space<vmem>>, vector<8x256xf32>
    %1 = arith.mulf %0, %0 : vector<8x256xf32>
    %cst = arith.constant 1.000000e+00 : f32
    %2 = vector.broadcast %cst : f32 to vector<8x256xf32>
    %3 = arith.mulf %1, %2 : vector<8x256xf32>
    %cst_1 = arith.constant 1.000000e+00 : f32
    %4 = vector.broadcast %cst_1 : f32 to vector<8x256xf32>
    %5 = arith.mulf %3, %4 : vector<8x256xf32>
    %cst_2 = arith.constant 1.000000e+00 : f32
    %6 = vector.broadcast %cst_2 : f32 to vector<8x256xf32>
    %7 = arith.addf %5, %6 : vector<8x256xf32>
    %8 = math.log %7 : vector<8x256xf32>
    %cst_3 = arith.constant -7.500000e-01 : f32
    %9 = vector.broadcast %cst_3 : f32 to vector<8x256xf32>
    %10 = arith.mulf %9, %8 : vector<8x256xf32>
    %11 = math.exp %10 : vector<8x256xf32>
    %12 = arith.mulf %0, %11 : vector<8x256xf32>
    %c0_4 = arith.constant 0 : index
    %c0_5 = arith.constant 0 : index
    %13 = vector.load %arg2[%c0_4, %c0_5] : memref<8x256xf32, #tpu.memory_space<vmem>>, vector<8x256xf32>
    tpu.vector_store %arg2[%c0_4, %c0_5], %12 {strides = array<i32>} : memref<8x256xf32, #tpu.memory_space<vmem>>, vector<8x256xf32>,
    return
  }
  func.func @transform_0(%arg0: i32) -> (i32, i32) {
    %c0_i32 = arith.constant 0 : i32
    %c0_i32_0 = arith.constant 0 : i32
    return %arg0, %c0_i32 : i32, i32
  }
  func.func @transform_1(%arg0: i32) -> (i32, i32) {
    %c0_i32 = arith.constant 0 : i32
    %c0_i32_0 = arith.constant 0 : i32
    return %arg0, %c0_i32 : i32, i32
  }
}

</mosaic_0001>

<llo_original>
// kernel: tpu_custom_call.1
$region0: #{tpu_custom_call.1}
  #allocation0 [shape = 'u32[]', space=smem, size = 0x4, offset = 0x4, fixed_abs, tag = 'smem constant byte address 0x4 - core index']
  #allocation1 [shape = 'u32[72,128]{1,0:T(1,128)}', space=vmem, size = 0x9000, scoped, tag = 'internal scratch']
  %s0 = inlined_call_operand.hbm [shape: f32[8,256], index: 0, kind: input, shape index: {}]
  %s1 = inlined_call_operand.hbm [shape: f32[8,256], index: 1, kind: output, shape index: {}]
  %s2 = sld [smem:[#allocation0]]
  $region18: #{tpu_custom_call.1} parent=0
    _
  %s4 = ssub.s32 1, %s2
  %s5 = scalar_select 0, %s4, %s2
  $region1: #{tpu_custom_call.1} parent=0
    #allocation2 [shape = 'u8[8192]{0}', space=vmem, size = 0x2000, scoped, tag = 'input window, operand 0, single buffered']
    #allocation3 [shape = 's32[1]{0}', space=sflag, size = 0x4, scoped, tag = 'scoped memory for tpu_custom_call.1']
    #allocation4 [shape = 's32[1]{0}', space=sflag, size = 0x4, scoped, tag = 'scoped memory for tpu_custom_call.1']
    #allocation5 [shape = 'u8[8192]{0}', space=vmem, size = 0x2000, scoped, tag = 'output window, operand 0, single buffered']
    %6 = vsyncpa [#allocation3], 0
    %7 = vsyncpa [#allocation4], 0
    // Predicated region
    $region2: #{tpu_custom_call.1} parent=1 // pred_check
      _
    $region3: #{tpu_custom_call.1} parent=1 // pred_check_branch
      %9 = sbr.rel (0) target = $region5
    $region4: #{tpu_custom_call.1} parent=1 // pred_region
      %11 = vsyncadd [#allocation3], 0
      %s13 = sshll.u32 %s0, 4
      %s14 = int_to_ptr.hbm [resolvable:$true] %s13
      %s15 = sshll.u32 [#allocation2], 4
      %s16 = int_to_ptr.vmem [resolvable:$true] %s15
      %18 = dma.hbm_to_vmem [thread:$0]  %s14, 256, %s16, [#allocation3]
    $region5: #{tpu_custom_call.1} parent=1 // pred_fallthru
      _
    // Predicated region
    $region6: #{tpu_custom_call.1} parent=1 // pred_check
      _
    $region7: #{tpu_custom_call.1} parent=1 // pred_check_branch
      %20 = sbr.rel (0) target = $region9
    $region8: #{tpu_custom_call.1} parent=1 // pred_region
      %22 = dma.done [#allocation3], 256
    $region9: #{tpu_custom_call.1} parent=1 // pred_fallthru
      _
    %v23 = vld [vmem:[#allocation2] sm:$0xff]
    %v24 = vld [vmem:[#allocation2 + $0x8] sm:$0xff]
    %v25 = vmul.f32 %v23, %v23
    %v26 = vmul.f32 %v24, %v24
    %v27 = vadd.f32 %v25, 1.0
    %v28 = vadd.f32 %v26, 1.0
    %v29 = vlog2.pop %v27
    %v30 = vmul.f32 %v29, 0.6931472
    %v31 = vlog2.pop %v28
    %v32 = vmul.f32 %v31, 0.6931472
    %v33 = vmul.f32 %v30, -0.75
    %v34 = vmul.f32 %v32, -0.75
    %v35 = vmul.f32 %v33, 1.442695
    %v36 = vpow.pop %v35
    %v37 = vmul.f32 %v34, 1.442695
    %v38 = vpow.pop %v37
    %v39 = vmul.f32 %v23, %v36
    %v40 = vmul.f32 %v24, %v38
    %41 = vst [vmem:[#allocation5] sm:$0xff] %v39
    %42 = vst [vmem:[#allocation5 + $0x8] sm:$0xff] %v40
    // Predicated region
    $region10: #{tpu_custom_call.1} parent=1 // pred_check
      _
    $region11: #{tpu_custom_call.1} parent=1 // pred_check_branch
      %44 = sbr.rel (0) target = $region13
    $region12: #{tpu_custom_call.1} parent=1 // pred_region
      %46 = vsyncadd [#allocation4], 0
      %s48 = sshll.u32 [#allocation5], 4
      %s49 = int_to_ptr.vmem [resolvable:$true] %s48
      %s50 = sshll.u32 %s1, 4
      %s51 = int_to_ptr.hbm [resolvable:$true] %s50
      %53 = dma.vmem_to_hbm [thread:$0]  %s49, 256, %s51, [#allocation4]
    $region13: #{tpu_custom_call.1} parent=1 // pred_fallthru
      _
    // Predicated region
    $region14: #{tpu_custom_call.1} parent=1 // pred_check
      _
    $region15: #{tpu_custom_call.1} parent=1 // pred_check_branch
      %55 = sbr.rel (0) target = $region17
    $region16: #{tpu_custom_call.1} parent=1 // pred_region
      %57 = dma.done [#allocation4], 256
    $region17: #{tpu_custom_call.1} parent=1 // pred_fallthru
      _
    %58 = vsyncpa [#allocation3], 1
    %59 = vsyncpa [#allocation4], 1

</llo_original>
